<compile_context>
chip_gen: v6e
topology: v6e:2x2x1
jax: 0.10.0
libtpu: 0.0.40
codegen_flags: <defaults>
</compile_context>

<pallas_src>
import functools

import numpy as np

import jax
import jax.numpy as jnp
from jax import lax
from jax.experimental import pallas as pl
from jax.experimental.pallas import tpu as pltpu


# ----------------------------------------------------------------------------
# Fused kernel: Conv3x3(pad=1, no bias) -> BatchNorm(batch stats) -> Tanh
#               -> nearest Upsample, emitted directly in NCHW.
# ----------------------------------------------------------------------------
def _fused_block_kernel(*refs, H, W, upsample, conv_dtype):
    if upsample == 1:
        (x_ref, w_ref, g_ref, b_ref, o_ref,
         p_sc, y_sc, sum_sc, ssq_sc) = refs
        rep_ref = None
    else:
        (x_ref, w_ref, g_ref, b_ref, rep_ref, o_ref,
         p_sc, y_sc, sum_sc, ssq_sc) = refs

    phase = pl.program_id(0)           # 0: conv + stats, 1: normalize + store
    n = pl.program_id(1)               # batch index
    N, Cout, HW = y_sc.shape
    Cin = x_ref.shape[1]

    # ---- one-time init of persistent scratch: the margins of the patch
    # ---- matrix stay zero forever; the stat accumulators start at zero. ----
    @pl.when(jnp.logical_and(phase == 0, n == 0))
    def _init():
        p_sc[...] = jnp.zeros_like(p_sc)
        sum_sc[...] = jnp.zeros_like(sum_sc)
        ssq_sc[...] = jnp.zeros_like(ssq_sc)

    # ---- phase 0: conv for image n (single K = 9*Cin matmul) + stats -------
    @pl.when(phase == 0)
    def _conv_and_stats():
        # Assemble the (9*Cin, H*W) patch matrix in VMEM scratch.  For tap
        # (dy, dx) its rows are the flat input shifted by d = (dy-1)*W+(dx-1);
        # pixels that fall outside the image are zero (halo handled here).
        # Only static slices, masked stores and iota/compare are used: no
        # reshapes, rolls, concatenates or transposes inside the kernel.
        col_full = lax.broadcasted_iota(jnp.int32, (Cin, HW), 1) % W
        for dy in range(3):
            for dx in range(3):
                t = dy * 3 + dx
                d = (dy - 1) * W + (dx - 1)
                a = max(0, -d)                 # first written destination lane
                b = min(HW, HW - d)            # one past the last written lane
                xs = x_ref[0, :, a + d:b + d]  # (Cin, b - a)
                if dx != 1:
                    # zero columns that wrapped across an image row boundary
                    bad = 0 if dx == 0 else W - 1
                    xs = jnp.where(col_full[:, a:b] != bad, xs,
                                   jnp.zeros_like(xs))
                p_sc[t * Cin:(t + 1) * Cin, a:b] = xs

        # Single lane-dense MXU matmul: (Cout, 9*Cin) @ (9*Cin, H*W).
        y = jnp.dot(w_ref[...].astype(conv_dtype),
                    p_sc[...].astype(conv_dtype),
                    preferred_element_type=jnp.float32)      # (Cout, H*W) f32
        y_sc[n] = y
        sum_sc[...] += jnp.sum(y, axis=1, keepdims=True)
        ssq_sc[...] += jnp.sum(y * y, axis=1, keepdims=True)

    # ---- phase 1: batch-norm (training-mode stats) + tanh + upsample -------
    @pl.when(phase == 1)
    def _normalize_and_store():
        # Finalize batch statistics once; repurpose the stat scratch to cache
        # the fused scale / shift so the rsqrt isn't redone for every image.
        @pl.when(n == 0)
        def _finalize_stats():
            inv_cnt = 1.0 / float(N * HW)
            mean = sum_sc[...] * inv_cnt                            # (Cout, 1)
            var = jnp.maximum(ssq_sc[...] * inv_cnt - mean * mean, 0.0)
            scale = lax.rsqrt(var + 1e-5) * g_ref[...]              # (Cout, 1)
            shift = b_ref[...] - mean * scale
            sum_sc[...] = scale
            ssq_sc[...] = shift

        t = jnp.tanh(y_sc[n] * sum_sc[...] + ssq_sc[...])           # (Cout, HW)

        if upsample == 1:
            o_ref[0] = t.astype(o_ref.dtype)
        else:
            # Nearest-neighbour upsample as a replication matmul with a
            # precomputed 0/1 matrix: stays on the MXU, keeps the store
            # lane-dense, avoids in-kernel reshapes.
            o_ref[0] = jnp.dot(
                t.astype(rep_ref.dtype), rep_ref[...],
                preferred_element_type=jnp.float32).astype(o_ref.dtype)


# ----------------------------------------------------------------------------
# Host-side constant: nearest-neighbour replication matrix (HW, HW*u*u) with
#   out[:, p] = t[:, (p // (W*u*u)) * W + (p % (W*u)) // u]
# ----------------------------------------------------------------------------
def _upsample_matrix(H, W, u, dtype):
    HW, Wu = H * W, W * u
    HWu = HW * u * u
    dst = np.arange(HWu)
    src = (dst // (Wu * u)) * W + (dst % Wu) // u
    rep = np.zeros((HW, HWu), np.float32)
    rep[src, dst] = 1.0
    return jnp.asarray(rep, dtype)


# ----------------------------------------------------------------------------
# Wrapper: layout bookkeeping only (all reshapes are free bitcasts).
# ----------------------------------------------------------------------------
@functools.partial(jax.jit, static_argnames=("upsample", "conv_dtype"))
def block_forward(x_nchw, w_oihw, gamma, beta, *, upsample=1,
                  conv_dtype=jnp.float32):
    N, Cin, H, W = x_nchw.shape
    Cout = w_oihw.shape[0]
    HW = H * W
    HWu = HW * upsample * upsample
    last = N - 1

    # Flatten spatial onto the lane axis (contiguous merge -> free in XLA).
    x_flat = x_nchw.reshape(N, Cin, HW).astype(jnp.float32)
    # (Cout, 9*Cin) with column order (dy, dx, cin) matching the patch matrix.
    w2 = jnp.transpose(w_oihw, (0, 2, 3, 1)).reshape(Cout, 9 * Cin)
    w2 = w2.astype(jnp.float32)
    g2 = gamma.reshape(Cout, 1).astype(jnp.float32)
    b2 = beta.reshape(Cout, 1).astype(jnp.float32)

    kernel = functools.partial(_fused_block_kernel, H=H, W=W,
                               upsample=upsample, conv_dtype=conv_dtype)

    in_specs = [
        # x: fetched per image in phase 0; pinned to the already-resident
        # last block during phase 1 (no redundant re-fetch of x).
        pl.BlockSpec((1, Cin, HW), lambda p, n: ((1 - p) * n + p * last, 0, 0)),
        pl.BlockSpec((Cout, 9 * Cin), lambda p, n: (0, 0)),
        pl.BlockSpec((Cout, 1), lambda p, n: (0, 0)),
        pl.BlockSpec((Cout, 1), lambda p, n: (0, 0)),
    ]
    args = [x_flat, w2, g2, b2]
    if upsample != 1:
        in_specs.append(pl.BlockSpec((HW, HWu), lambda p, n: (0, 0)))
        args.append(_upsample_matrix(H, W, upsample, jnp.float32))

    out = pl.pallas_call(
        kernel,
        out_shape=jax.ShapeDtypeStruct((N, Cout, HWu), jnp.float32),
        grid_spec=pltpu.PrefetchScalarGridSpec(
            num_scalar_prefetch=0,
            grid=(2, N),                               # (phase, batch)
            in_specs=in_specs,
            # Phase 0 never writes the output: park all phase-0 steps on block
            # 0 so no garbage block is flushed; each output block is written
            # back to HBM exactly once (after its phase-1 step).
            out_specs=pl.BlockSpec((1, Cout, HWu), lambda p, n: (p * n, 0, 0)),
            scratch_shapes=[
                pltpu.VMEM((9 * Cin, HW), jnp.float32),   # patch matrix
                pltpu.VMEM((N, Cout, HW), jnp.float32),   # conv outputs, resident
                pltpu.VMEM((Cout, 1), jnp.float32),       # sum   -> later: scale
                pltpu.VMEM((Cout, 1), jnp.float32),       # sumsq -> later: shift
            ],
        ),
        compiler_params=pltpu.CompilerParams(
            # BatchNorm batch statistics couple all grid steps -> sequential.
            dimension_semantics=("arbitrary", "arbitrary")),
    )(*args)

    # Split the flat spatial axis back out: (N, Cout, H*up, W*up), NCHW.
    return out.reshape(N, Cout, H * upsample, W * upsample)


# ----------------------------------------------------------------------------
# Pure-JAX reference for correctness checking.
# ----------------------------------------------------------------------------
def reference_forward(x_nchw, w_oihw, gamma, beta, upsample=1):
    y = lax.conv_general_dilated(
        x_nchw, w_oihw, window_strides=(1, 1), padding=((1, 1), (1, 1)),
        dimension_numbers=("NCHW", "OIHW", "NCHW"))
    mean = jnp.mean(y, axis=(0, 2, 3), keepdims=True)
    var = jnp.var(y, axis=(0, 2, 3), keepdims=True)   # biased, like PyTorch BN
    yn = (y - mean) * lax.rsqrt(var + 1e-5)
    yn = yn * gamma.reshape(1, -1, 1, 1) + beta.reshape(1, -1, 1, 1)
    yn = jnp.tanh(yn)
    if upsample != 1:
        yn = jnp.repeat(jnp.repeat(yn, upsample, axis=2), upsample, axis=3)
    return yn


if __name__ == "__main__":
    # Small shapes consistent with Block(in_channels=4, out_channels=8).
    N, Cin, Cout, H, W = 2, 4, 8, 16, 16

    key = jax.random.PRNGKey(0)
    kx, kw = jax.random.split(key)
    x = jax.random.normal(kx, (N, Cin, H, W), dtype=jnp.float32)
    # Conv2d weight (OIHW), deterministic scaled-normal init.
    w = jax.random.normal(kw, (Cout, Cin, 3, 3), dtype=jnp.float32) * 0.1
    # BatchNorm2d default init: weight=1, bias=0.
    gamma = jnp.ones((Cout,), jnp.float32)
    beta = jnp.zeros((Cout,), jnp.float32)

    for upsample in (1, 2):
        out = block_forward(x, w, gamma, beta, upsample=upsample)
        out = jax.block_until_ready(out)
        ref = reference_forward(x, w, gamma, beta, upsample=upsample)
        assert out.shape == (N, Cout, H * upsample, W * upsample), out.shape
        err = float(jnp.max(jnp.abs(out - ref)))
        assert err < 1e-4, (upsample, err)

    print("KERNEL_OK")
</pallas_src>

<mosaic_0001>
module attributes {stable_mosaic.version = 11 : i64} {
  func.func @_fused_block_kernel(%arg0: i32, %arg1: i32, %arg2: memref<1x4x256xf32, #tpu.memory_space<vmem>>, %arg3: memref<8x36xf32, #tpu.memory_space<vmem>>, %arg4: memref<8x1xf32, #tpu.memory_space<vmem>>, %arg5: memref<8x1xf32, #tpu.memory_space<vmem>>, %arg6: memref<1x8x256xf32, #tpu.memory_space<vmem>>, %arg7: memref<36x256xf32, #tpu.memory_space<vmem>>, %arg8: memref<2x8x256xf32, #tpu.memory_space<vmem>>, %arg9: memref<8x1xf32, #tpu.memory_space<vmem>>, %arg10: memref<8x1xf32, #tpu.memory_space<vmem>>) attributes {dimension_semantics = [#tpu.dimension_semantics<arbitrary>, #tpu.dimension_semantics<arbitrary>], iteration_bounds = array<i64: 2, 2>, scalar_prefetch = 0 : i64, scratch_operands = 4 : i64, tpu.core_type = #tpu.core_type<tc>, window_params = [{transform_indices = @transform_0, window_bounds = array<i64: 1, 4, 256>}, {pipeline_mode = #tpu.pipeline_mode<synchronous>, transform_indices = @transform_1, window_bounds = array<i64: 8, 36>}, {pipeline_mode = #tpu.pipeline_mode<synchronous>, transform_indices = @transform_2, window_bounds = array<i64: 8, 1>}, {pipeline_mode = #tpu.pipeline_mode<synchronous>, transform_indices = @transform_3, window_bounds = array<i64: 8, 1>}, {transform_indices = @transform_4, window_bounds = array<i64: 1, 8, 256>}]} {
    %c0_i32 = arith.constant 0 : i32
    %0 = arith.cmpi eq, %arg0, %c0_i32 : i32
    %c0_i32_0 = arith.constant 0 : i32
    %1 = arith.cmpi eq, %arg1, %c0_i32_0 : i32
    %2 = arith.andi %0, %1 : i1
    %3 = arith.extui %2 : i1 to i32
    %c0_i32_1 = arith.constant 0 : i32
    %4 = arith.cmpi ne, %3, %c0_i32_1 : i32
    scf.if %4 {
      %cst = arith.constant 0.000000e+00 : f32
      %11 = vector.broadcast %cst : f32 to vector<36x256xf32>
      %c0 = arith.constant 0 : index
      %c0_5 = arith.constant 0 : index
      %12 = vector.load %arg7[%c0, %c0_5] : memref<36x256xf32, #tpu.memory_space<vmem>>, vector<36x256xf32>
      tpu.vector_store %arg7[%c0, %c0_5], %11 {strides = array<i32>} : memref<36x256xf32, #tpu.memory_space<vmem>>, vector<36x256xf32>,
      %cst_6 = arith.constant 0.000000e+00 : f32
      %13 = vector.broadcast %cst_6 : f32 to vector<8x1xf32>
      %c0_7 = arith.constant 0 : index
      %c0_8 = arith.constant 0 : index
      %14 = vector.load %arg9[%c0_7, %c0_8] : memref<8x1xf32, #tpu.memory_space<vmem>>, vector<8x1xf32>
      tpu.vector_store %arg9[%c0_7, %c0_8], %13 {strides = array<i32>} : memref<8x1xf32, #tpu.memory_space<vmem>>, vector<8x1xf32>,
      %cst_9 = arith.constant 0.000000e+00 : f32
      %15 = vector.broadcast %cst_9 : f32 to vector<8x1xf32>
      %c0_10 = arith.constant 0 : index
      %c0_11 = arith.constant 0 : index
      %16 = vector.load %arg10[%c0_10, %c0_11] : memref<8x1xf32, #tpu.memory_space<vmem>>, vector<8x1xf32>
      tpu.vector_store %arg10[%c0_10, %c0_11], %15 {strides = array<i32>} : memref<8x1xf32, #tpu.memory_space<vmem>>, vector<8x1xf32>,
    } else {
    }
    %c0_i32_2 = arith.constant 0 : i32
    %5 = arith.cmpi eq, %arg0, %c0_i32_2 : i32
    %6 = arith.extui %5 : i1 to i32
    %c0_i32_3 = arith.constant 0 : i32
    %7 = arith.cmpi ne, %6, %c0_i32_3 : i32
    scf.if %7 {
      %11 = tpu.iota {dimensions = array<i32: 1>} : vector<4x256xi32>
      %c16_i32 = arith.constant 16 : i32
      %c0_i32_5 = arith.constant 0 : i32
      %12 = arith.cmpi eq, %c16_i32, %c0_i32_5 : i32
      %c1_i32_6 = arith.constant 1 : i32
      %13 = arith.select %12, %c1_i32_6, %c16_i32 : i32
      %14 = vector.broadcast %13 : i32 to vector<4x256xi32>
      %15 = arith.remsi %11, %14 : vector<4x256xi32>
      %c0_i32_7 = arith.constant 0 : i32
      %16 = vector.broadcast %c0_i32_7 : i32 to vector<4x256xi32>
      %17 = arith.cmpi ne, %15, %16 : vector<4x256xi32>
      %c0_i32_8 = arith.constant 0 : i32
      %18 = vector.broadcast %c0_i32_8 : i32 to vector<4x256xi32>
      %19 = arith.cmpi slt, %15, %18 : vector<4x256xi32>
      %c0_i32_9 = arith.constant 0 : i32
      %20 = arith.cmpi slt, %13, %c0_i32_9 : i32
      %21 = vector.broadcast %20 : i1 to vector<4x256xi1>
      %22 = vector.broadcast %21 : vector<4x256xi1> to vector<4x256xi1>
      %23 = arith.xori %19, %22 : vector<4x256xi1>
      %24 = arith.andi %23, %17 : vector<4x256xi1>
      %25 = vector.broadcast %13 : i32 to vector<4x256xi32>
      %26 = arith.addi %15, %25 : vector<4x256xi32>
      %27 = arith.select %24, %26, %15 : vector<4x256xi1>, vector<4x256xi32>
      %c0 = arith.constant 0 : index
      %c0_10 = arith.constant 0 : index
      %c0_11 = arith.constant 0 : index
      %28 = vector.load %arg2[%c0, %c0_10, %c0_11] : memref<1x4x256xf32, #tpu.memory_space<vmem>>, vector<1x4x239xf32>
      %29 = vector.shape_cast %28 : vector<1x4x239xf32> to vector<4x239xf32>
      %30 = vector.extract_strided_slice %27 {offsets = [0, 17], sizes = [4, 239], strides = [1, 1]} : vector<4x256xi32> to vector<4x239xi32>
      %c0_i32_12 = arith.constant 0 : i32
      %31 = vector.broadcast %c0_i32_12 : i32 to vector<4x239xi32>
      %32 = arith.cmpi ne, %30, %31 : vector<4x239xi32>
      %cst = arith.constant 0.000000e+00 : f32
      %33 = vector.broadcast %cst : f32 to vector<4x239xf32>
      %34 = arith.select %32, %29, %33 : vector<4x239xi1>, vector<4x239xf32>
      %c0_13 = arith.constant 0 : index
      %c17 = arith.constant 17 : index
      %35 = vector.load %arg7[%c0_13, %c17] : memref<36x256xf32, #tpu.memory_space<vmem>>, vector<4x239xf32>
      tpu.vector_store %arg7[%c0_13, %c17], %34 {strides = array<i32>} : memref<36x256xf32, #tpu.memory_space<vmem>>, vector<4x239xf32>,
      %c0_14 = arith.constant 0 : index
      %c0_15 = arith.constant 0 : index
      %c0_16 = arith.constant 0 : index
      %36 = vector.load %arg2[%c0_14, %c0_15, %c0_16] : memref<1x4x256xf32, #tpu.memory_space<vmem>>, vector<1x4x240xf32>
      %37 = vector.shape_cast %36 : vector<1x4x240xf32> to vector<4x240xf32>
      %c4 = arith.constant 4 : index
      %c16 = arith.constant 16 : index
      %38 = vector.load %arg7[%c4, %c16] : memref<36x256xf32, #tpu.memory_space<vmem>>, vector<4x240xf32>
      tpu.vector_store %arg7[%c4, %c16], %37 {strides = array<i32>} : memref<36x256xf32, #tpu.memory_space<vmem>>, vector<4x240xf32>,
      %c0_17 = arith.constant 0 : index
      %c0_18 = arith.constant 0 : index
      %c0_19 = arith.constant 0 : index
      %39 = vector.load %arg2[%c0_17, %c0_18, %c0_19] : memref<1x4x256xf32, #tpu.memory_space<vmem>>, vector<1x4x241xf32>
      %40 = vector.shape_cast %39 : vector<1x4x241xf32> to vector<4x241xf32>
      %41 = vector.extract_strided_slice %27 {offsets = [0, 15], sizes = [4, 241], strides = [1, 1]} : vector<4x256xi32> to vector<4x241xi32>
      %c15_i32 = arith.constant 15 : i32
      %42 = vector.broadcast %c15_i32 : i32 to vector<4x241xi32>
      %43 = arith.cmpi ne, %41, %42 : vector<4x241xi32>
      %cst_20 = arith.constant 0.000000e+00 : f32
      %44 = vector.broadcast %cst_20 : f32 to vector<4x241xf32>
      %45 = arith.select %43, %40, %44 : vector<4x241xi1>, vector<4x241xf32>
      %c8 = arith.constant 8 : index
      %c15 = arith.constant 15 : index
      %46 = vector.load %arg7[%c8, %c15] : memref<36x256xf32, #tpu.memory_space<vmem>>, vector<4x241xf32>
      tpu.vector_store %arg7[%c8, %c15], %45 {strides = array<i32>} : memref<36x256xf32, #tpu.memory_space<vmem>>, vector<4x241xf32>,
      %c0_21 = arith.constant 0 : index
      %c0_22 = arith.constant 0 : index
      %c0_23 = arith.constant 0 : index
      %47 = vector.load %arg2[%c0_21, %c0_22, %c0_23] : memref<1x4x256xf32, #tpu.memory_space<vmem>>, vector<1x4x255xf32>
      %48 = vector.shape_cast %47 : vector<1x4x255xf32> to vector<4x255xf32>
      %49 = vector.extract_strided_slice %27 {offsets = [0, 1], sizes = [4, 255], strides = [1, 1]} : vector<4x256xi32> to vector<4x255xi32>
      %c0_i32_24 = arith.constant 0 : i32
      %50 = vector.broadcast %c0_i32_24 : i32 to vector<4x255xi32>
      %51 = arith.cmpi ne, %49, %50 : vector<4x255xi32>
      %cst_25 = arith.constant 0.000000e+00 : f32
      %52 = vector.broadcast %cst_25 : f32 to vector<4x255xf32>
      %53 = arith.select %51, %48, %52 : vector<4x255xi1>, vector<4x255xf32>
      %c12 = arith.constant 12 : index
      %c1 = arith.constant 1 : index
      %54 = vector.load %arg7[%c12, %c1] : memref<36x256xf32, #tpu.memory_space<vmem>>, vector<4x255xf32>
      tpu.vector_store %arg7[%c12, %c1], %53 {strides = array<i32>} : memref<36x256xf32, #tpu.memory_space<vmem>>, vector<4x255xf32>,
      %c0_26 = arith.constant 0 : index
      %c0_27 = arith.constant 0 : index
      %c0_28 = arith.constant 0 : index
      %55 = vector.load %arg2[%c0_26, %c0_27, %c0_28] : memref<1x4x256xf32, #tpu.memory_space<vmem>>, vector<1x4x256xf32>
      %56 = vector.shape_cast %55 : vector<1x4x256xf32> to vector<4x256xf32>
      %c16_29 = arith.constant 16 : index
      %c0_30 = arith.constant 0 : index
      %57 = vector.load %arg7[%c16_29, %c0_30] : memref<36x256xf32, #tpu.memory_space<vmem>>, vector<4x256xf32>
      tpu.vector_store %arg7[%c16_29, %c0_30], %56 {strides = array<i32>} : memref<36x256xf32, #tpu.memory_space<vmem>>, vector<4x256xf32>,
      %c0_31 = arith.constant 0 : index
      %c0_32 = arith.constant 0 : index
      %c1_33 = arith.constant 1 : index
      %58 = vector.load %arg2[%c0_31, %c0_32, %c1_33] : memref<1x4x256xf32, #tpu.memory_space<vmem>>, vector<1x4x255xf32>
      %59 = vector.shape_cast %58 : vector<1x4x255xf32> to vector<4x255xf32>
      %60 = vector.extract_strided_slice %27 {offsets = [0, 0], sizes = [4, 255], strides = [1, 1]} : vector<4x256xi32> to vector<4x255xi32>
      %c15_i32_34 = arith.constant 15 : i32
      %61 = vector.broadcast %c15_i32_34 : i32 to vector<4x255xi32>
      %62 = arith.cmpi ne, %60, %61 : vector<4x255xi32>
      %cst_35 = arith.constant 0.000000e+00 : f32
      %63 = vector.broadcast %cst_35 : f32 to vector<4x255xf32>
      %64 = arith.select %62, %59, %63 : vector<4x255xi1>, vector<4x255xf32>
      %c20 = arith.constant 20 : index
      %c0_36 = arith.constant 0 : index
      %65 = vector.load %arg7[%c20, %c0_36] : memref<36x256xf32, #tpu.memory_space<vmem>>, vector<4x255xf32>
      tpu.vector_store %arg7[%c20, %c0_36], %64 {strides = array<i32>} : memref<36x256xf32, #tpu.memory_space<vmem>>, vector<4x255xf32>,
      %c0_37 = arith.constant 0 : index
      %c0_38 = arith.constant 0 : index
      %c15_39 = arith.constant 15 : index
      %66 = vector.load %arg2[%c0_37, %c0_38, %c15_39] : memref<1x4x256xf32, #tpu.memory_space<vmem>>, vector<1x4x241xf32>
      %67 = vector.shape_cast %66 : vector<1x4x241xf32> to vector<4x241xf32>
      %68 = vector.extract_strided_slice %27 {offsets = [0, 0], sizes = [4, 241], strides = [1, 1]} : vector<4x256xi32> to vector<4x241xi32>
      %c0_i32_40 = arith.constant 0 : i32
      %69 = vector.broadcast %c0_i32_40 : i32 to vector<4x241xi32>
      %70 = arith.cmpi ne, %68, %69 : vector<4x241xi32>
      %cst_41 = arith.constant 0.000000e+00 : f32
      %71 = vector.broadcast %cst_41 : f32 to vector<4x241xf32>
      %72 = arith.select %70, %67, %71 : vector<4x241xi1>, vector<4x241xf32>
      %c24 = arith.constant 24 : index
      %c0_42 = arith.constant 0 : index
      %73 = vector.load %arg7[%c24, %c0_42] : memref<36x256xf32, #tpu.memory_space<vmem>>, vector<4x241xf32>
      tpu.vector_store %arg7[%c24, %c0_42], %72 {strides = array<i32>} : memref<36x256xf32, #tpu.memory_space<vmem>>, vector<4x241xf32>,
      %c0_43 = arith.constant 0 : index
      %c0_44 = arith.constant 0 : index
      %c16_45 = arith.constant 16 : index
      %74 = vector.load %arg2[%c0_43, %c0_44, %c16_45] : memref<1x4x256xf32, #tpu.memory_space<vmem>>, vector<1x4x240xf32>
      %75 = vector.shape_cast %74 : vector<1x4x240xf32> to vector<4x240xf32>
      %c28 = arith.constant 28 : index
      %c0_46 = arith.constant 0 : index
      %76 = vector.load %arg7[%c28, %c0_46] : memref<36x256xf32, #tpu.memory_space<vmem>>, vector<4x240xf32>
      tpu.vector_store %arg7[%c28, %c0_46], %75 {strides = array<i32>} : memref<36x256xf32, #tpu.memory_space<vmem>>, vector<4x240xf32>,
      %c0_47 = arith.constant 0 : index
      %c0_48 = arith.constant 0 : index
      %c17_49 = arith.constant 17 : index
      %77 = vector.load %arg2[%c0_47, %c0_48, %c17_49] : memref<1x4x256xf32, #tpu.memory_space<vmem>>, vector<1x4x239xf32>
      %78 = vector.shape_cast %77 : vector<1x4x239xf32> to vector<4x239xf32>
      %79 = vector.extract_strided_slice %27 {offsets = [0, 0], sizes = [4, 239], strides = [1, 1]} : vector<4x256xi32> to vector<4x239xi32>
      %c15_i32_50 = arith.constant 15 : i32
      %80 = vector.broadcast %c15_i32_50 : i32 to vector<4x239xi32>
      %81 = arith.cmpi ne, %79, %80 : vector<4x239xi32>
      %cst_51 = arith.constant 0.000000e+00 : f32
      %82 = vector.broadcast %cst_51 : f32 to vector<4x239xf32>
      %83 = arith.select %81, %78, %82 : vector<4x239xi1>, vector<4x239xf32>
      %c32 = arith.constant 32 : index
      %c0_52 = arith.constant 0 : index
      %84 = vector.load %arg7[%c32, %c0_52] : memref<36x256xf32, #tpu.memory_space<vmem>>, vector<4x239xf32>
      tpu.vector_store %arg7[%c32, %c0_52], %83 {strides = array<i32>} : memref<36x256xf32, #tpu.memory_space<vmem>>, vector<4x239xf32>,
      %c0_53 = arith.constant 0 : index
      %c0_54 = arith.constant 0 : index
      %85 = vector.load %arg3[%c0_53, %c0_54] : memref<8x36xf32, #tpu.memory_space<vmem>>, vector<8x36xf32>
      %c0_55 = arith.constant 0 : index
      %c0_56 = arith.constant 0 : index
      %86 = vector.load %arg7[%c0_55, %c0_56] : memref<36x256xf32, #tpu.memory_space<vmem>>, vector<36x256xf32>
      %cst_57 = arith.constant dense<0.000000e+00> : vector<8x256xf32>
      %87 = tpu.matmul %85, %86, %cst_57 {dimension_numbers = #tpu.dot_dimension_numbers<[1], [0], [0], [1], [0, 0, 1, 1], [], []>} : vector<8x36xf32>, vector<36x256xf32>, vector<8x256xf32> -> vector<8x256xf32>
      %88 = arith.index_cast %arg1 : i32 to index
      %c0_58 = arith.constant 0 : index
      %c0_59 = arith.constant 0 : index
      %89 = vector.load %arg8[%88, %c0_58, %c0_59] : memref<2x8x256xf32, #tpu.memory_space<vmem>>, vector<1x8x256xf32>
      %90 = vector.shape_cast %89 : vector<1x8x256xf32> to vector<8x256xf32>
      %91 = vector.shape_cast %87 : vector<8x256xf32> to vector<1x8x256xf32>
      tpu.vector_store %arg8[%88, %c0_58, %c0_59], %91 {strides = array<i32>} : memref<2x8x256xf32, #tpu.memory_space<vmem>>, vector<1x8x256xf32>,
      %c0_60 = arith.constant 0 : index
      %c0_61 = arith.constant 0 : index
      %92 = vector.load %arg9[%c0_60, %c0_61] : memref<8x1xf32, #tpu.memory_space<vmem>>, vector<8x1xf32>
      %cst_62 = arith.constant dense<0.000000e+00> : vector<8xf32>
      %93 = vector.multi_reduction <add>, %87, %cst_62 [1] : vector<8x256xf32> to vector<8xf32>
      %94 = vector.shape_cast %93 : vector<8xf32> to vector<8x1xf32>
      %95 = arith.addf %92, %94 : vector<8x1xf32>
      %c0_63 = arith.constant 0 : index
      %c0_64 = arith.constant 0 : index
      %96 = vector.load %arg9[%c0_63, %c0_64] : memref<8x1xf32, #tpu.memory_space<vmem>>, vector<8x1xf32>
      tpu.vector_store %arg9[%c0_63, %c0_64], %95 {strides = array<i32>} : memref<8x1xf32, #tpu.memory_space<vmem>>, vector<8x1xf32>,
      %c0_65 = arith.constant 0 : index
      %c0_66 = arith.constant 0 : index
      %97 = vector.load %arg10[%c0_65, %c0_66] : memref<8x1xf32, #tpu.memory_space<vmem>>, vector<8x1xf32>
      %98 = arith.mulf %87, %87 : vector<8x256xf32>
      %cst_67 = arith.constant dense<0.000000e+00> : vector<8xf32>
      %99 = vector.multi_reduction <add>, %98, %cst_67 [1] : vector<8x256xf32> to vector<8xf32>
      %100 = vector.shape_cast %99 : vector<8xf32> to vector<8x1xf32>
      %101 = arith.addf %97, %100 : vector<8x1xf32>
      %c0_68 = arith.constant 0 : index
      %c0_69 = arith.constant 0 : index
      %102 = vector.load %arg10[%c0_68, %c0_69] : memref<8x1xf32, #tpu.memory_space<vmem>>, vector<8x1xf32>
      tpu.vector_store %arg10[%c0_68, %c0_69], %101 {strides = array<i32>} : memref<8x1xf32, #tpu.memory_space<vmem>>, vector<8x1xf32>,
    } else {
    }
    %c1_i32 = arith.constant 1 : i32
    %8 = arith.cmpi eq, %arg0, %c1_i32 : i32
    %9 = arith.extui %8 : i1 to i32
    %c0_i32_4 = arith.constant 0 : i32
    %10 = arith.cmpi ne, %9, %c0_i32_4 : i32
    scf.if %10 {
      %c0_i32_5 = arith.constant 0 : i32
      %11 = arith.cmpi eq, %arg1, %c0_i32_5 : i32
      %12 = arith.extui %11 : i1 to i32
      %c0_i32_6 = arith.constant 0 : i32
      %13 = arith.cmpi ne, %12, %c0_i32_6 : i32
      scf.if %13 {
        %c0_15 = arith.constant 0 : index
        %c0_16 = arith.constant 0 : index
        %27 = vector.load %arg9[%c0_15, %c0_16] : memref<8x1xf32, #tpu.memory_space<vmem>>, vector<8x1xf32>
        %cst = arith.constant 0.001953125 : f32
        %28 = vector.broadcast %cst : f32 to vector<8x1xf32>
        %29 = arith.mulf %27, %28 : vector<8x1xf32>
        %c0_17 = arith.constant 0 : index
        %c0_18 = arith.constant 0 : index
        %30 = vector.load %arg10[%c0_17, %c0_18] : memref<8x1xf32, #tpu.memory_space<vmem>>, vector<8x1xf32>
        %cst_19 = arith.constant 0.001953125 : f32
        %31 = vector.broadcast %cst_19 : f32 to vector<8x1xf32>
        %32 = arith.mulf %30, %31 : vector<8x1xf32>
        %33 = arith.mulf %29, %29 : vector<8x1xf32>
        %34 = arith.subf %32, %33 : vector<8x1xf32>
        %cst_20 = arith.constant 0.000000e+00 : f32
        %35 = vector.broadcast %cst_20 : f32 to vector<8x1xf32>
        %36 = arith.maximumf %34, %35 : vector<8x1xf32>
        %cst_21 = arith.constant 9.99999974E-6 : f32
        %37 = vector.broadcast %cst_21 : f32 to vector<8x1xf32>
        %38 = arith.addf %36, %37 : vector<8x1xf32>
        %39 = math.rsqrt %38 : vector<8x1xf32>
        %c0_22 = arith.constant 0 : index
        %c0_23 = arith.constant 0 : index
        %40 = vector.load %arg4[%c0_22, %c0_23] : memref<8x1xf32, #tpu.memory_space<vmem>>, vector<8x1xf32>
        %41 = arith.mulf %39, %40 : vector<8x1xf32>
        %c0_24 = arith.constant 0 : index
        %c0_25 = arith.constant 0 : index
        %42 = vector.load %arg5[%c0_24, %c0_25] : memref<8x1xf32, #tpu.memory_space<vmem>>, vector<8x1xf32>
        %43 = arith.mulf %29, %41 : vector<8x1xf32>
        %44 = arith.subf %42, %43 : vector<8x1xf32>
        %c0_26 = arith.constant 0 : index
        %c0_27 = arith.constant 0 : index
        %45 = vector.load %arg9[%c0_26, %c0_27] : memref<8x1xf32, #tpu.memory_space<vmem>>, vector<8x1xf32>
        tpu.vector_store %arg9[%c0_26, %c0_27], %41 {strides = array<i32>} : memref<8x1xf32, #tpu.memory_space<vmem>>, vector<8x1xf32>,
        %c0_28 = arith.constant 0 : index
        %c0_29 = arith.constant 0 : index
        %46 = vector.load %arg10[%c0_28, %c0_29] : memref<8x1xf32, #tpu.memory_space<vmem>>, vector<8x1xf32>
        tpu.vector_store %arg10[%c0_28, %c0_29], %44 {strides = array<i32>} : memref<8x1xf32, #tpu.memory_space<vmem>>, vector<8x1xf32>,
      } else {
      }
      %14 = arith.index_cast %arg1 : i32 to index
      %c0 = arith.constant 0 : index
      %c0_7 = arith.constant 0 : index
      %15 = vector.load %arg8[%14, %c0, %c0_7] : memref<2x8x256xf32, #tpu.memory_space<vmem>>, vector<1x8x256xf32>
      %16 = vector.shape_cast %15 : vector<1x8x256xf32> to vector<8x256xf32>
      %c0_8 = arith.constant 0 : index
      %c0_9 = arith.constant 0 : index
      %17 = vector.load %arg9[%c0_8, %c0_9] : memref<8x1xf32, #tpu.memory_space<vmem>>, vector<8x1xf32>
      %18 = vector.broadcast %17 : vector<8x1xf32> to vector<8x256xf32>
      %19 = arith.mulf %16, %18 : vector<8x256xf32>
      %c0_10 = arith.constant 0 : index
      %c0_11 = arith.constant 0 : index
      %20 = vector.load %arg10[%c0_10, %c0_11] : memref<8x1xf32, #tpu.memory_space<vmem>>, vector<8x1xf32>
      %21 = vector.broadcast %20 : vector<8x1xf32> to vector<8x256xf32>
      %22 = arith.addf %19, %21 : vector<8x256xf32>
      %23 = math.tanh %22 : vector<8x256xf32>
      %c0_12 = arith.constant 0 : index
      %c0_13 = arith.constant 0 : index
      %c0_14 = arith.constant 0 : index
      %24 = vector.load %arg6[%c0_12, %c0_13, %c0_14] : memref<1x8x256xf32, #tpu.memory_space<vmem>>, vector<1x8x256xf32>
      %25 = vector.shape_cast %24 : vector<1x8x256xf32> to vector<8x256xf32>
      %26 = vector.shape_cast %23 : vector<8x256xf32> to vector<1x8x256xf32>
      tpu.vector_store %arg6[%c0_12, %c0_13, %c0_14], %26 {strides = array<i32>} : memref<1x8x256xf32, #tpu.memory_space<vmem>>, vector<1x8x256xf32>,
    } else {
    }
    return
  }
  func.func @transform_0(%arg0: i32, %arg1: i32) -> (i32, i32, i32) {
    %c1_i32 = arith.constant 1 : i32
    %0 = arith.subi %c1_i32, %arg0 : i32
    %1 = arith.muli %0, %arg1 : i32
    %c1_i32_0 = arith.constant 1 : i32
    %2 = arith.muli %arg0, %c1_i32_0 : i32
    %3 = arith.addi %1, %2 : i32
    %c0_i32 = arith.constant 0 : i32
    %c0_i32_1 = arith.constant 0 : i32
    %c0_i32_2 = arith.constant 0 : i32
    return %3, %c0_i32, %c0_i32_1 : i32, i32, i32
  }
  func.func @transform_1(%arg0: i32, %arg1: i32) -> (i32, i32) {
    %c0_i32 = arith.constant 0 : i32
    %c0_i32_0 = arith.constant 0 : i32
    %c0_i32_1 = arith.constant 0 : i32
    return %c0_i32, %c0_i32_0 : i32, i32
  }
  func.func @transform_2(%arg0: i32, %arg1: i32) -> (i32, i32) {
    %c0_i32 = arith.constant 0 : i32
    %c0_i32_0 = arith.constant 0 : i32
    %c0_i32_1 = arith.constant 0 : i32
    return %c0_i32, %c0_i32_0 : i32, i32
  }
  func.func @transform_3(%arg0: i32, %arg1: i32) -> (i32, i32) {
    %c0_i32 = arith.constant 0 : i32
    %c0_i32_0 = arith.constant 0 : i32
    %c0_i32_1 = arith.constant 0 : i32
    return %c0_i32, %c0_i32_0 : i32, i32
  }
  func.func @transform_4(%arg0: i32, %arg1: i32) -> (i32, i32, i32) {
    %0 = arith.muli %arg0, %arg1 : i32
    %c0_i32 = arith.constant 0 : i32
    %c0_i32_0 = arith.constant 0 : i32
    %c0_i32_1 = arith.constant 0 : i32
    return %0, %c0_i32, %c0_i32_0 : i32, i32, i32
  }
}

</mosaic_0001>

<llo_original>
// kernel: block_forward.1
$region0: #{block_forward.1}
  #allocation0 [shape = 'u32[]', space=smem, size = 0x4, offset = 0x4, fixed_abs, tag = 'smem constant byte address 0x4 - core index']
  #allocation1 [shape = 'u32[144,128]{1,0:T(1,128)}', space=vmem, size = 0x12000, scoped, tag = 'internal scratch']
  #allocation2 [shape = 'f32[36,256]{1,0:T(8,128)}', space=vmem, size = 0xa000, scoped, tag = 'scratch operand']
  #allocation3 [shape = 'f32[2,8,256]{2,1,0:T(8,128)}', space=vmem, size = 0x4000, scoped, tag = 'scratch operand']
  #allocation4 [shape = 'f32[8,1]{1,0:T(8,128)}', space=vmem, size = 0x1000, scoped, tag = 'scratch operand']
  #allocation5 [shape = 'f32[8,1]{1,0:T(8,128)}', space=vmem, size = 0x1000, scoped, tag = 'scratch operand']
  %s0 = inlined_call_operand.vmem [shape: f32[2,4,256], index: 0, kind: input, shape index: {}]
  %s1 = inlined_call_operand.vmem [shape: f32[8,36], index: 1, kind: input, shape index: {}]
  %s2 = inlined_call_operand.vmem [shape: f32[8,1], index: 2, kind: input, shape index: {}]
  %s3 = inlined_call_operand.vmem [shape: f32[8,1], index: 3, kind: input, shape index: {}]
  %s4 = inlined_call_operand.vmem [shape: f32[2,8,256], index: 4, kind: output, shape index: {}]
  %s5 = sld [smem:[#allocation0]]
  $region65: #{block_forward.1} parent=0
    _
  %s7 = ssub.s32 1, %s5
  %s8 = scalar_select 0, %s7, %s5
  loop: start=0, step=1, limit=6
  $region2: #{block_forward.1} parent=0 // loop_pre_header
    _
  $region3: #{block_forward.1} parent=0 // loop_header
    %s10 = sphi 0, %s14
    %p11 = scmp.ge.s32.totalorder %s10, 6
    %s17 = sphi 0, %s29
    %s18 = sphi 0, %s25
    %s19 = sphi 0, %s17
    %s20 = sphi 0, %s18
    %s21 = sphi 0, %s19
    %s22 = sphi 0, %s20
    %s38 = sphi 0, %s40
    %s41 = sphi 0, %s38
    %s42 = sphi 0, %s41
    %s58 = sphi 0, %s42
    %s62 = sphi 0, %s62
    %s64 = sphi 0, %s62
    %s65 = sphi 0, %s64
    %s79 = sphi 0, %s65
    %s83 = sphi 0, %s83
    %s85 = sphi 0, %s83
    %s86 = sphi 0, %s85
    %s100 = sphi 0, %s86
    %s104 = sphi 0, %s104
    %s106 = sphi 0, %s104
    %s107 = sphi 0, %s106
    %s121 = sphi 0, %s107
    %s129 = sphi 0, %s131
    %s132 = sphi 0, %s129
    %s133 = sphi 0, %s132
    %s149 = sphi 0, %s133
  $region4: #{block_forward.1} parent=0 // loop_header_branch
    %13 = sbr.rel (%p11) target = $region8
  $region5: #{block_forward.1} parent=0 // loop_body
    %s15 = ssub.s32 %s10, 1
    %s16 = ssub.s32 %s10, 2
    %s23 = sadd.s32 1, %s18
    %p24 = scmp.ge.s32.totalorder %s23, 2
    %s25 = scalar_select %p24, 0, %s23
    %s26 = sadd.s32 1, %s17
    %s27 = scalar_select %p24, %s26, %s17
    %p28 = scmp.ge.s32.totalorder %s27, 2
    %s29 = scalar_select %p28, 0, %s27
    %s30 = ssub.s32 1, %s17
    %s31 = smul.u32 %s30, %s18
    %s32 = sadd.s32 %s31, %s17
    %s33 = ssub.s32 1, %s29
    %s34 = smul.u32 %s33, %s25
    %s35 = sadd.s32 %s34, %s29
    %s36 = ssub.s32 %s32, %s35
    %p37 = scmp.eq.s32.totalorder %s36, 0
    %s39 = sadd.s32 %s38, 1
    %s40 = scalar_select %p37, %s38, %s39
    %p43 = pneg %p37
    %p44 = scmp.eq.s32.totalorder %s10, 3
    %p45 = por %p43, %p44
    %p46 = scmp.ne.s32.totalorder %s38, %s41
    %p47 = scmp.eq.s32.totalorder %s10, 0
    %p48 = por %p46, %p47
    %p49 = scmp.ne.s32.totalorder %s38, %s41
    %p50 = scmp.eq.s32.totalorder %s15, 3
    %p51 = por %p49, %p50
    %p52 = scmp.ne.s32.totalorder %s41, %s42
    %p53 = scmp.eq.s32.totalorder %s15, 0
    %p54 = por %p52, %p53
    %p55 = scmp.ne.s32.totalorder %s41, %s42
    %p56 = scmp.eq.s32.totalorder %s16, 3
    %p57 = por %p55, %p56
    %p59 = scmp.ne.s32.totalorder %s42, %s58
    %p60 = scmp.eq.s32.totalorder %s16, 0
    %p61 = por %p59, %p60
    %s63 = sadd.s32 %s62, 1
    %p66 = scmp.eq.s32.totalorder %s10, 3
    %p67 = scmp.ne.s32.totalorder %s62, %s64
    %p68 = scmp.eq.s32.totalorder %s10, 0
    %p69 = por %p67, %p68
    %p70 = scmp.ne.s32.totalorder %s62, %s64
    %p71 = scmp.eq.s32.totalorder %s15, 3
    %p72 = por %p70, %p71
    %p73 = scmp.ne.s32.totalorder %s64, %s65
    %p74 = scmp.eq.s32.totalorder %s15, 0
    %p75 = por %p73, %p74
    %p76 = scmp.ne.s32.totalorder %s64, %s65
    %p77 = scmp.eq.s32.totalorder %s16, 3
    %p78 = por %p76, %p77
    %p80 = scmp.ne.s32.totalorder %s65, %s79
    %p81 = scmp.eq.s32.totalorder %s16, 0
    %p82 = por %p80, %p81
    %s84 = sadd.s32 %s83, 1
    %p87 = scmp.eq.s32.totalorder %s10, 3
    %p88 = scmp.ne.s32.totalorder %s83, %s85
    %p89 = scmp.eq.s32.totalorder %s10, 0
    %p90 = por %p88, %p89
    %p91 = scmp.ne.s32.totalorder %s83, %s85
    %p92 = scmp.eq.s32.totalorder %s15, 3
    %p93 = por %p91, %p92
    %p94 = scmp.ne.s32.totalorder %s85, %s86
    %p95 = scmp.eq.s32.totalorder %s15, 0
    %p96 = por %p94, %p95
    %p97 = scmp.ne.s32.totalorder %s85, %s86
    %p98 = scmp.eq.s32.totalorder %s16, 3
    %p99 = por %p97, %p98
    %p101 = scmp.ne.s32.totalorder %s86, %s100
    %p102 = scmp.eq.s32.totalorder %s16, 0
    %p103 = por %p101, %p102
    %s105 = sadd.s32 %s104, 1
    %p108 = scmp.eq.s32.totalorder %s10, 3
    %p109 = scmp.ne.s32.totalorder %s104, %s106
    %p110 = scmp.eq.s32.totalorder %s10, 0
    %p111 = por %p109, %p110
    %p112 = scmp.ne.s32.totalorder %s104, %s106
    %p113 = scmp.eq.s32.totalorder %s15, 3
    %p114 = por %p112, %p113
    %p115 = scmp.ne.s32.totalorder %s106, %s107
    %p116 = scmp.eq.s32.totalorder %s15, 0
    %p117 = por %p115, %p116
    %p118 = scmp.ne.s32.totalorder %s106, %s107
    %p119 = scmp.eq.s32.totalorder %s16, 3
    %p120 = por %p118, %p119
    %p122 = scmp.ne.s32.totalorder %s107, %s121
    %p123 = scmp.eq.s32.totalorder %s16, 0
    %p124 = por %p122, %p123
    %s125 = smul.u32 %s17, %s18
    %s126 = smul.u32 %s29, %s25
    %s127 = ssub.s32 %s125, %s126
    %p128 = scmp.eq.s32.totalorder %s127, 0
    %s130 = sadd.s32 %s129, 1
    %s131 = scalar_select %p128, %s129, %s130
    %p134 = pneg %p128
    %p135 = scmp.eq.s32.totalorder %s10, 3
    %p136 = por %p134, %p135
    %p137 = scmp.ne.s32.totalorder %s129, %s132
    %p138 = scmp.eq.s32.totalorder %s10, 0
    %p139 = por %p137, %p138
    %p140 = scmp.ne.s32.totalorder %s129, %s132
    %p141 = scmp.eq.s32.totalorder %s15, 3
    %p142 = por %p140, %p141
    %p143 = scmp.ne.s32.totalorder %s132, %s133
    %p144 = scmp.eq.s32.totalorder %s15, 0
    %p145 = por %p143, %p144
    %p146 = scmp.ne.s32.totalorder %s132, %s133
    %p147 = scmp.eq.s32.totalorder %s16, 3
    %p148 = por %p146, %p147
    %p150 = scmp.ne.s32.totalorder %s133, %s149
    %p151 = scmp.eq.s32.totalorder %s16, 0
    %p152 = por %p150, %p151
    %p153 = scmp.le.s32.totalorder 1, %s10
    %p154 = scmp.lt.s32.totalorder %s10, 5
    %p155 = pnand %p153, %p154
    %p156 = pneg %p155
    // Predicated region
    $region9: #{block_forward.1} parent=5 // pred_check
      _
    $region10: #{block_forward.1} parent=5 // pred_check_branch
      %158 = sbr.rel (%p155) target = $region12
    $region11: #{block_forward.1} parent=5 // pred_region
      %s159 = ssub.s32 %s10, 1
      // Predicated region
      $region13: #{block_forward.1} parent=11 // pred_check
        %p160 = pneg %p75
      $region14: #{block_forward.1} parent=11 // pred_check_branch
        %162 = sbr.rel (%p160) target = $region16
      $region15: #{block_forward.1} parent=11 // pred_region
        _
      $region16: #{block_forward.1} parent=11 // pred_fallthru
        _
      // Predicated region
      $region17: #{block_forward.1} parent=11 // pred_check
        %p163 = pneg %p96
      $region18: #{block_forward.1} parent=11 // pred_check_branch
        %165 = sbr.rel (%p163) target = $region20
      $region19: #{block_forward.1} parent=11 // pred_region
        _
      $region20: #{block_forward.1} parent=11 // pred_fallthru
        _
      // Predicated region
      $region21: #{block_forward.1} parent=11 // pred_check
        %p166 = pneg %p117
      $region22: #{block_forward.1} parent=11 // pred_check_branch
        %168 = sbr.rel (%p166) target = $region24
      $region23: #{block_forward.1} parent=11 // pred_region
        _
      $region24: #{block_forward.1} parent=11 // pred_fallthru
        _
    $region12: #{block_forward.1} parent=5 // pred_fallthru
      _
    %p169 = scmp.lt.s32.totalorder %s10, 4
    // Predicated region
    $region25: #{block_forward.1} parent=5 // pred_check
      %p170 = pneg %p169
    $region26: #{block_forward.1} parent=5 // pred_check_branch
      %172 = sbr.rel (%p170) target = $region28
    $region27: #{block_forward.1} parent=5 // pred_region
      // Predicated region
      $region29: #{block_forward.1} parent=27 // pred_check
        %p173 = pneg %p48
      $region30: #{block_forward.1} parent=27 // pred_check_branch
        %175 = sbr.rel (%p173) target = $region32
      $region31: #{block_forward.1} parent=27 // pred_region
        %s176 = ssub.s32 1, %s17
        %s177 = smul.u32 %s176, %s18
        %s178 = sadd.s32 %s177, %s17
        %p179 = scmp.lt.s32.totalorder %s178, 1
        %s180 = scalar_select %p179, %s178, 1
        %s181 = smul.addr %s180, 2
        %s182 = smul.addr %s181, 4
        %s183 = scalar_lea.vmem %s0, %s182
        %s184 = ssub.s32 1, %s17
        %s185 = smul.u32 %s184, %s18
        %s186 = sadd.s32 %s185, %s17
      $region32: #{block_forward.1} parent=27 // pred_fallthru
        _
    $region28: #{block_forward.1} parent=5 // pred_fallthru
      _
    %p187 = scmp.le.s32.totalorder 1, %s10
    %p188 = scmp.lt.s32.totalorder %s10, 5
    %p189 = pnand %p187, %p188
    %p190 = pneg %p189
    // Predicated region
    $region33: #{block_forward.1} parent=5 // pred_check
      _
    $region34: #{block_forward.1} parent=5 // pred_check_branch
      %192 = sbr.rel (%p189) target = $region36
    $region35: #{block_forward.1} parent=5 // pred_region
      %s193 = ssub.s32 %s10, 1
      %s194 = ssub.s32 1, %s19
      %s195 = smul.u32 %s194, %s20
      %s196 = sadd.s32 %s195, %s19
      %p197 = scmp.lt.s32.totalorder %s196, 1
      %s198 = scalar_select %p197, %s196, 1
      %s199 = smul.addr %s198, 2
      %s200 = smul.addr %s199, 4
      %s201 = scalar_lea.vmem %s0, %s200
      %p202 = pneg %p54
      %p203 = pneg %p51
      %p204 = pneg %p75
      %p205 = pneg %p72
      %p206 = pneg %p96
      %p207 = pneg %p93
      %p208 = pneg %p117
      %p209 = pneg %p114
      %p210 = pneg %p145
      %p211 = pneg %p142
      %s212 = smul.u32 %s19, %s20
      %p213 = scmp.lt.s32.totalorder %s212, 1
      %s214 = scalar_select %p213, %s212, 1
      %s215 = smul.addr %s214, 2
      %s216 = smul.addr %s215, 8
      %s217 = scalar_lea.vmem %s4, %s216
      %s218 = ssub.s32 1, %s19
      %s219 = smul.u32 %s218, %s20
      %s220 = sadd.s32 %s219, %s19
      %p221 = scmp.lt.s32.totalorder %s220, 1
      %s222 = scalar_select %p221, %s220, 1
      %s223 = smul.addr %s222, 2
      %s224 = smul.addr %s223, 4
      %s225 = scalar_lea.vmem %s0, %s224
      %s226 = ssub.s32 1, %s19
      %s227 = smul.u32 %s226, %s20
      %s228 = sadd.s32 %s227, %s19
      %s229 = smul.u32 %s19, %s20
      %p230 = scmp.lt.s32.totalorder %s229, 1
      %s231 = scalar_select %p230, %s229, 1
      %s232 = smul.addr %s231, 2
      %s233 = smul.addr %s232, 8
      %s234 = scalar_lea.vmem %s4, %s233
      %s235 = smul.u32 %s19, %s20
      %p236 = scmp.eq.s32.totalorder %s19, 0
      %p237 = scmp.eq.s32.totalorder %s20, 0
      %p238 = pnand %p236, %p237
      %p239 = pneg %p238
      // Predicated region
      $region37: #{block_forward.1} parent=35 // pred_check
        _
      $region38: #{block_forward.1} parent=35 // pred_check_branch
        %241 = sbr.rel (%p238) target = $region40
      $region39: #{block_forward.1} parent=35 // pred_region
        %242 = vst [vmem:[#allocation2] sm:$0xff] 0.0
        %243 = vst [vmem:[#allocation2 + $0x8] sm:$0xff] 0.0
        %244 = vst [vmem:[#allocation2 + $0x10] sm:$0xff] 0.0
        %245 = vst [vmem:[#allocation2 + $0x18] sm:$0xff] 0.0
        %246 = vst [vmem:[#allocation2 + $0x20] sm:$0xff] 0.0
        %247 = vst [vmem:[#allocation2 + $0x28] sm:$0xff] 0.0
        %248 = vst [vmem:[#allocation2 + $0x30] sm:$0xff] 0.0
        %249 = vst [vmem:[#allocation2 + $0x38] sm:$0xff] 0.0
        %250 = vst [vmem:[#allocation2 + $0x40] sm:$0xf] 0.0
        %251 = vst [vmem:[#allocation2 + $0x48] sm:$0xf] 0.0
        %vm252 = vcmask 7168
        %253 = vst.msk [vmem:[#allocation4] sm:$0xff] %vm252, 0.0
        %254 = vst.msk [vmem:[#allocation5] sm:$0xff] %vm252, 0.0
      $region40: #{block_forward.1} parent=35 // pred_fallthru
        _
      // Predicated region
      $region41: #{block_forward.1} parent=35 // pred_check
        %p255 = pneg %p236
      $region42: #{block_forward.1} parent=35 // pred_check_branch
        %257 = sbr.rel (%p255) target = $region44
      $region43: #{block_forward.1} parent=35 // pred_region
        %v258 = vlaneseq
        %v259 = vand.u32 %v258, 127
        %v260 = vadd.s32 %v259, 128
        %vm261 = vcmp.lt.s32.totalorder %v259, 0
        %v262 = vsub.s32 0, %v259
        %v263 = vsel %vm261, %v262, %v259
        %v264 = vshrl.u32 %v263, 4
        %v265 = vand.u32 %v263, 15
        %v266 = vsub.s32 0, %v265
        %v267 = vsel %vm261, %v266, %v265
        %vm268 = vcmp.lt.s32.totalorder %v260, 0
        %v269 = vsub.s32 0, %v260
        %v270 = vsel %vm268, %v269, %v260
        %v271 = vshrl.u32 %v270, 4
        %v272 = vand.u32 %v270, 15
        %v273 = vsub.s32 0, %v272
        %v274 = vsel %vm268, %v273, %v272
        %vm275 = vcmp.ne.s32.totalorder %v267, 0
        %vm276 = vcmp.ne.s32.totalorder %v274, 0
        %vm277 = vcmp.lt.s32.totalorder %v267, 0
        %vm278 = vcmp.lt.s32.totalorder %v274, 0
        %vm279 = vmand %vm277, %vm275
        %vm280 = vmand %vm278, %vm276
        %v281 = vadd.s32 %v267, 16
        %v282 = vadd.s32 %v274, 16
        %v283 = vsel %vm279, %v281, %v267
        %v284 = vsel %vm280, %v282, %v274
        %v285 = vld [vmem:[%s225] sm:$0xff]
        %vm286 = vcmp.ne.s32.totalorder %v283, 0
        %vm287 = vcmp.ne.s32.totalorder %v284, 0
        %v289 = vcombine.high %v285, %v285
        %290 = vrot.lane.b32.xlu0 %v285, 17
        %v291 = vpop.permute.xlu0 %290
        %292 = vrot.lane.b32.xlu0 %v289, 17
        %v293 = vpop.permute.xlu0 %292
        %vm294 = vcmask 138240
        %v295 = vsel %vm294, %v291, %v293
        %v298 = vsel %vm286, %v291, 0.0
        %v299 = vsel %vm287, %v295, 0.0
        %vm300 = vcmask 1043592
        %301 = vst.msk [vmem:[#allocation2] sm:$0xf] %vm300, %v298
        %302 = vst [vmem:[#allocation2 + $0x8] sm:$0xf] %v299
        %v303 = vld [vmem:[%s225] sm:$0xff]
        %v305 = vcombine.low %v303, %v303
        %306 = vrot.lane.b32.xlu0 %v305, 16
        %v307 = vpop.permute.xlu0 %306
        %308 = vrot.lane.b32.xlu0 %v303, 16
        %v309 = vpop.permute.xlu0 %308
        %vm310 = vcmask 130048
        %v311 = vsel %vm310, %v307, %v309
        %vm314 = vcmask 1047684
        %315 = vst.msk [vmem:[#allocation2] sm:$0xf0] %vm314, %v307
        %316 = vst [vmem:[#allocation2 + $0x8] sm:$0xf0] %v311
        %v317 = vld [vmem:[%s225] sm:$0xff]
        %vm318 = vcmp.ne.s32.totalorder %v283, 15
        %vm319 = vcmp.ne.s32.totalorder %v284, 15
        %v321 = vcombine.high %v317, %v317
        %322 = vrot.lane.b32.xlu0 %v317, 15
        %v323 = vpop.permute.xlu0 %322
        %324 = vrot.lane.b32.xlu0 %v321, 15
        %v325 = vpop.permute.xlu0 %324
        %vm326 = vcmask 121856
        %v327 = vsel %vm326, %v323, %v325
        %v330 = vsel %vm318, %v323, 0.0
        %v331 = vsel %vm319, %v327, 0.0
        %vm332 = vcmask 1043576
        %333 = vst.msk [vmem:[#allocation2 + $0x10] sm:$0xf] %vm332, %v330
        %334 = vst [vmem:[#allocation2 + $0x18] sm:$0xf] %v331
        %v335 = vld [vmem:[%s225] sm:$0xff]
        %v337 = vcombine.high %v335, %v335
        %338 = vrot.lane.b32.xlu0 %v335, 1
        %v339 = vpop.permute.xlu0 %338
        %340 = vrot.lane.b32.xlu0 %v337, 1
        %v341 = vpop.permute.xlu0 %340
        %vm342 = vcmask 7168
        %v343 = vsel %vm342, %v339, %v341
        %v346 = vsel %vm286, %v339, 0.0
        %v347 = vsel %vm287, %v343, 0.0
        %v350 = vrot.slane %v346, 4
        %v351 = vrot.slane %v347, 4
        %vm354 = vcmask 1047564
        %355 = vst.msk [vmem:[#allocation2 + $0x10] sm:$0xf0] %vm354, %v350
        %356 = vst [vmem:[#allocation2 + $0x18] sm:$0xf0] %v351
        %v357 = vld [vmem:[%s225] sm:$0xff]
        %v359 = vcombine.high %v357, %v357
        %361 = vst [vmem:[#allocation2 + $0x20] sm:$0xf] %v357
        %362 = vst [vmem:[#allocation2 + $0x28] sm:$0xf] %v359
        %v363 = vld [vmem:[%s225] sm:$0xff]
        %v365 = vcombine.high %v363, %v363
        %366 = vrot.lane.b32.xlu0 %v363, 127
        %v367 = vpop.permute.xlu0 %366
        %368 = vrot.lane.b32.xlu0 %v365, 127
        %v369 = vpop.permute.xlu0 %368
        %vm370 = vcmask 1039360
        %v371 = vsel %vm370, %v367, %v369
        %v374 = vsel %vm318, %v371, 0.0
        %v375 = vsel %vm319, %v369, 0.0
        %v378 = vrot.slane %v374, 4
        %v379 = vrot.slane %v375, 4
        %382 = vst [vmem:[#allocation2 + $0x20] sm:$0xf0] %v378
        %vm383 = vcmask 1039364
        %384 = vst.msk [vmem:[#allocation2 + $0x28] sm:$0xf0] %vm383, %v379
        %v385 = vld [vmem:[%s225] sm:$0xff]
        %v387 = vcombine.high %v385, %v385
        %388 = vrot.lane.b32.xlu0 %v385, 113
        %v389 = vpop.permute.xlu0 %388
        %390 = vrot.lane.b32.xlu0 %v387, 113
        %v391 = vpop.permute.xlu0 %390
        %vm392 = vcmask 924672
        %v393 = vsel %vm392, %v389, %v391
        %v396 = vsel %vm286, %v393, 0.0
        %v397 = vsel %vm287, %v391, 0.0
        %398 = vst [vmem:[#allocation2 + $0x30] sm:$0xf] %v396
        %vm399 = vcmask 920576
        %400 = vst.msk [vmem:[#allocation2 + $0x38] sm:$0xf] %vm399, %v397
        %v401 = vld [vmem:[%s225] sm:$0xff]
        %v403 = vcombine.low %v401, %v401
        %404 = vrot.lane.b32.xlu0 %v403, 112
        %v405 = vpop.permute.xlu0 %404
        %406 = vrot.lane.b32.xlu0 %v401, 112
        %v407 = vpop.permute.xlu0 %406
        %vm408 = vcmask 916480
        %v409 = vsel %vm408, %v405, %v407
        %412 = vst [vmem:[#allocation2 + $0x30] sm:$0xf0] %v409
        %vm413 = vcmask 916484
        %414 = vst.msk [vmem:[#allocation2 + $0x38] sm:$0xf0] %vm413, %v407
        %v415 = vld [vmem:[%s225] sm:$0xff]
        %v417 = vcombine.high %v415, %v415
        %418 = vrot.lane.b32.xlu0 %v415, 111
        %v419 = vpop.permute.xlu0 %418
        %420 = vrot.lane.b32.xlu0 %v417, 111
        %v421 = vpop.permute.xlu0 %420
        %vm422 = vcmask 908288
        %v423 = vsel %vm422, %v419, %v421
        %v426 = vsel %vm318, %v423, 0.0
        %v427 = vsel %vm319, %v421, 0.0
        %428 = vst [vmem:[#allocation2 + $0x40] sm:$0xf] %v426
        %vm429 = vcmask 904192
        %430 = vst.msk [vmem:[#allocation2 + $0x48] sm:$0xf] %vm429, %v427
        %v431 = vld [vmem:[%s1] sm:$0xff]
        %v432 = vld [vmem:[#allocation2] sm:$0xff]
        %v433 = vld [vmem:[#allocation2 + $0x8] sm:$0xff]
        %v434 = vld [vmem:[#allocation2 + $0x10] sm:$0xff]
        %v435 = vld [vmem:[#allocation2 + $0x18] sm:$0xff]
        %v436 = vld [vmem:[#allocation2 + $0x20] sm:$0xff]
        %v437 = vld [vmem:[#allocation2 + $0x28] sm:$0xff]
        %v438 = vld [vmem:[#allocation2 + $0x30] sm:$0xff]
        %v439 = vld [vmem:[#allocation2 + $0x38] sm:$0xff]
        %v440 = vld [vmem:[#allocation2 + $0x40] sm:$0xf]
        %v441 = vld [vmem:[#allocation2 + $0x48] sm:$0xf]
        %vm442 = vcmask 293888
        %v444 = vsel %vm442, %v431, 0
        %vm446 = vcmask 1043456
        %v448 = vsel %vm446, %v440, 0
        %v451 = vsel %vm446, %v441, 0
        %453 = vmatprep.subr.mxu0 0.0
        %454 = vmatpush1.msra.mxu0 0.0
        %455 = vmatprep.subr.mxu0 0.0
        %456 = vmatpush1.msra.mxu0 0.0
        %457 = vmatprep.subr.mxu0 0.0
        %458 = vmatpush1.msra.mxu0 0.0
        %459 = vmatprep.subr.mxu0 0.0
        %460 = vmatpush1.msra.mxu0 0.0
        %461 = vmatprep.subr.mxu0 0.0
        %462 = vmatpush1.msra.mxu0 0.0
        %463 = vmatprep.subr.mxu0 0.0
        %464 = vmatpush1.msra.mxu0 0.0
        %465 = vmatprep.subr.mxu0 0.0
        %466 = vmatpush1.msra.mxu0 0.0
        %467 = vmatprep.subr.mxu0 0.0
        %468 = vmatpush1.msra.mxu0 0.0
        %469 = vmatprep.subr.mxu0 0.0
        %470 = vmatpush1.msra.mxu0 0.0
        %471 = vmatprep.subr.mxu0 0.0
        %472 = vmatpush1.msra.mxu0 0.0
        %473 = vmatprep.subr.mxu0 0.0
        %474 = vmatpush1.msra.mxu0 0.0
        %475 = vmatprep.subr.mxu0 %v451
        %476 = vmatpush1.msra.mxu0 %v448
        %477 = vmatprep.subr.mxu0 %v439
        %478 = vmatpush1.msra.mxu0 %v438
        %479 = vmatprep.subr.mxu0 %v437
        %480 = vmatpush1.msra.mxu0 %v436
        %481 = vmatprep.subr.mxu0 %v435
        %482 = vmatpush1.msra.mxu0 %v434
        %483 = vmatprep.subr.mxu0 %v433
        %484 = vmatpush1.msra.mxu0 %v432
        %485 = vmatprep.subr.mxu0 0.0
        %486 = vmatpush2.msra.mxu0 0.0
        %487 = vmatprep.subr.mxu0 0.0
        %488 = vmatpush2.msra.mxu0 0.0
        %489 = vmatprep.subr.mxu0 0.0
        %490 = vmatpush2.msra.mxu0 0.0
        %491 = vmatprep.subr.mxu0 0.0
        %492 = vmatpush2.msra.mxu0 0.0
        %493 = vmatprep.subr.mxu0 0.0
        %494 = vmatpush2.msra.mxu0 0.0
        %495 = vmatprep.subr.mxu0 0.0
        %496 = vmatpush2.msra.mxu0 0.0
        %497 = vmatprep.subr.mxu0 0.0
        %498 = vmatpush2.msra.mxu0 0.0
        %499 = vmatprep.subr.mxu0 0.0
        %500 = vmatpush2.msra.mxu0 0.0
        %501 = vmatprep.subr.mxu0 0.0
        %502 = vmatpush2.msra.mxu0 0.0
        %503 = vmatprep.subr.mxu0 0.0
        %504 = vmatpush2.msra.mxu0 0.0
        %505 = vmatprep.subr.mxu0 0.0
        %506 = vmatpush2.msra.mxu0 0.0
        %507 = vmatprep.subr.mxu0 0.0
        %508 = vmatpush2.msra.mxu0 0.0
        %509 = vmatprep.subr.mxu0 0.0
        %510 = vmatpush2.msra.mxu0 0.0
        %511 = vmatprep.subr.mxu0 0.0
        %512 = vmatpush2.msra.mxu0 0.0
        %513 = vmatprep.subr.mxu0 0.0
        %514 = vmatpush2.msra.mxu0 0.0
        %515 = vmatprep.subr.mxu0 0.0
        %516 = vmatpush2.msra.mxu0 0.0
        %517 = vmatprep.mubr.f32.mxu0 0.0
        %518 = vmatmul.mubr.f32.gmra.mxu0 %v444
        %v519 = vpop.f32.mrf.mxu0
        %v520 = vadd.f32 0.0, %v519
        %v521 = vpop.f32.mrf.mxu0
        %v522 = vadd.f32 0.0, %v521
        %523 = vdwg.mxu0
        %s524 = smul.u32 %s20, 2
        %s525 = smul.addr %s524, 8
        %s526 = scalar_lea.vmem [#allocation3], %s525
        %527 = vst [vmem:[%s526] sm:$0xff] %v520
        %528 = vst [vmem:[%s526 + $0x8] sm:$0xff] %v522
        %v529 = vld [vmem:[#allocation4] sm:$0xff]
        %v530 = vadd.f32 %v520, %v522
        %531 = vadd.xlane.f32.xlu0 %v530
        %v532 = vpop.xlane.xlu0 %531
        %v533 = vadd.f32 %v529, %v532
        %534 = vst.msk [vmem:[#allocation4] sm:$0xff] %vm342, %v533
        %v535 = vld [vmem:[#allocation5] sm:$0xff]
        %v536 = vmul.f32 %v520, %v520
        %v537 = vmul.f32 %v522, %v522
        %v538 = vadd.f32 %v536, %v537
        %539 = vadd.xlane.f32.xlu0 %v538
        %v540 = vpop.xlane.xlu0 %539
        %v541 = vadd.f32 %v535, %v540
        %542 = vst.msk [vmem:[#allocation5] sm:$0xff] %vm342, %v541
      $region44: #{block_forward.1} parent=35 // pred_fallthru
        _
      %p543 = scmp.eq.s32.totalorder %s19, 1
      // Predicated region
      $region45: #{block_forward.1} parent=35 // pred_check
        %p544 = pneg %p543
      $region46: #{block_forward.1} parent=35 // pred_check_branch
        %546 = sbr.rel (%p544) target = $region48
      $region47: #{block_forward.1} parent=35 // pred_region
        // Predicated region
        $region49: #{block_forward.1} parent=47 // pred_check
          %p547 = pneg %p237
        $region50: #{block_forward.1} parent=47 // pred_check_branch
          %549 = sbr.rel (%p547) target = $region52
        $region51: #{block_forward.1} parent=47 // pred_region
          %v550 = vld [vmem:[#allocation4] sm:$0xff]
          %v551 = vmul.f32 %v550, 0.001953125
          %v552 = vld [vmem:[#allocation5] sm:$0xff]
          %v553 = vmul.f32 %v552, 0.001953125
          %v554 = vmul.f32 %v551, %v551
          %v555 = vsub.f32 %v553, %v554
          %v556 = vmax.f32 %v555, 0.0
          %v557 = vadd.f32 %v556, 1e-05
          %v558 = vrsqrt.pop %v557
          %v559 = vld [vmem:[%s2] sm:$0xff]
          %v560 = vmul.f32 %v558, %v559
          %v561 = vld [vmem:[%s3] sm:$0xff]
          %v562 = vmul.f32 %v551, %v560
          %v563 = vsub.f32 %v561, %v562
          %vm564 = vcmask 7168
          %565 = vst.msk [vmem:[#allocation4] sm:$0xff] %vm564, %v560
          %566 = vst.msk [vmem:[#allocation5] sm:$0xff] %vm564, %v563
        $region52: #{block_forward.1} parent=47 // pred_fallthru
          _
        %s567 = smul.u32 %s20, 2
        %s568 = smul.addr %s567, 8
        %s569 = scalar_lea.vmem [#allocation3], %s568
        %v570 = vld [vmem:[%s569] sm:$0xff]
        %v571 = vld [vmem:[%s569 + $0x8] sm:$0xff]
        %v572 = vld [vmem:[#allocation4] sm:$0xff]
        %574 = vset.pattern.permute.xlu0 0
        %575 = vperm.xlu0 %574, %v572
        %v576 = vpop.permute.xlu0 %575
        %v578 = vmul.f32 %v570, %v576
        %v579 = vmul.f32 %v571, %v576
        %v580 = vld [vmem:[#allocation5] sm:$0xff]
        %582 = vset.pattern.permute.xlu0 0
        %583 = vperm.xlu0 %582, %v580
        %v584 = vpop.permute.xlu0 %583
        %v586 = vadd.f32 %v578, %v584
        %v587 = vadd.f32 %v579, %v584
        %v588 = vtanh.pop %v586
        %v589 = vtanh.pop %v587
        %590 = vst [vmem:[%s234] sm:$0xff] %v588
        %591 = vst [vmem:[%s234 + $0x8] sm:$0xff] %v589
      $region48: #{block_forward.1} parent=35 // pred_fallthru
        _
      %s592 = smul.u32 %s19, %s20
      %p593 = scmp.lt.s32.totalorder %s592, 1
      %s594 = scalar_select %p593, %s592, 1
      %s595 = smul.addr %s594, 2
      %s596 = smul.addr %s595, 8
      %s597 = scalar_lea.vmem %s4, %s596
      // Predicated region
      $region53: #{block_forward.1} parent=35 // pred_check
        %p598 = pneg %p142
      $region54: #{block_forward.1} parent=35 // pred_check_branch
        %600 = sbr.rel (%p598) target = $region56
      $region55: #{block_forward.1} parent=35 // pred_region
        %s601 = smul.u32 %s19, %s20
      $region56: #{block_forward.1} parent=35 // pred_fallthru
        _
    $region36: #{block_forward.1} parent=5 // pred_fallthru
      _
    %p602 = scmp.le.s32.totalorder 2, %s10
    // Predicated region
    $region57: #{block_forward.1} parent=5 // pred_check
      %p603 = pneg %p602
    $region58: #{block_forward.1} parent=5 // pred_check_branch
      %605 = sbr.rel (%p603) target = $region60
    $region59: #{block_forward.1} parent=5 // pred_region
      %s606 = ssub.s32 %s10, 2
      // Predicated region
      $region61: #{block_forward.1} parent=59 // pred_check
        %p607 = pneg %p148
      $region62: #{block_forward.1} parent=59 // pred_check_branch
        %609 = sbr.rel (%p607) target = $region64
      $region63: #{block_forward.1} parent=59 // pred_region
        %s610 = smul.u32 %s21, %s22
        %p611 = scmp.lt.s32.totalorder %s610, 1
        %s612 = scalar_select %p611, %s610, 1
        %s613 = smul.addr %s612, 2
        %s614 = smul.addr %s613, 8
        %s615 = scalar_lea.vmem %s4, %s614
      $region64: #{block_forward.1} parent=59 // pred_fallthru
        _
    $region60: #{block_forward.1} parent=5 // pred_fallthru
      _
  $region6: #{block_forward.1} parent=0 // loop_footer
    %s14 = sadd.s32 1, %s10
  $region7: #{block_forward.1} parent=0 // loop_footer_branch
    %9 = sbr.rel target = $region3
  $region8: #{block_forward.1} parent=0 // loop_exit
    _

</llo_original>
